<compile_context>
chip_gen: v5e
topology: v5e:2x2
jax: 0.10.0
libtpu: 0.0.40
codegen_flags: <defaults>
</compile_context>

<pallas_src>
import numpy as np
import jax
import jax.numpy as jnp
from jax.experimental import pallas as pl
from jax.experimental.pallas import tpu as pltpu

_SENTINEL = np.int32(2 ** 30)  # never equals a (padded) node id


def _centrality_kernel(in_off_ref, out_off_ref,       # scalar-prefetch (SMEM)
                       dst_ref, src_ref, node_emb_ref, table_ref,
                       o_ref,
                       in_acc_ref, out_acc_ref):
    del in_off_ref, out_off_ref  # used only by the index_maps
    n_tile, d_pad = node_emb_ref.shape
    two_m = table_ref.shape[0]
    m = two_m // 2
    e_tile = dst_ref.shape[1]
    n_slabs = e_tile // 128

    k = pl.program_id(1)

    # ---- init per-lane degree accumulators at the first E step ----
    @pl.when(k == 0)
    def _():
        in_acc_ref[...] = jnp.zeros_like(in_acc_ref)
        out_acc_ref[...] = jnp.zeros_like(out_acc_ref)

    # ---- hot loop: VPU-only slab compares + per-lane partial sums ----
    row_base = pl.program_id(0) * n_tile
    node_ids = jax.lax.broadcasted_iota(jnp.int32, (n_tile, 128), 0) + row_base
    acc_in = jnp.zeros((n_tile, 128), jnp.int32)
    acc_out = jnp.zeros((n_tile, 128), jnp.int32)
    for j in range(n_slabs):                         # static, unrolled
        lo = j * 128
        d = dst_ref[:, lo:lo + 128]                  # [1, 128]
        s = src_ref[:, lo:lo + 128]                  # [1, 128]
        acc_in = acc_in + (node_ids == d).astype(jnp.int32)
        acc_out = acc_out + (node_ids == s).astype(jnp.int32)
    in_acc_ref[...] += acc_in
    out_acc_ref[...] += acc_out

    # ---- epilogue: cross-lane reduce, clamp/wrap, gather, add ----
    @pl.when(k == pl.num_programs(1) - 1)
    def _():
        def to_idx(deg):
            deg = jnp.minimum(deg, m)
            idx = deg - 1
            # PyTorch wraps index -1 (degree-0 nodes) to the last table row.
            return jnp.where(idx < 0, idx + m, idx)

        in_deg = jnp.sum(in_acc_ref[...], axis=-1, keepdims=True)    # [n_tile,1]
        out_deg = jnp.sum(out_acc_ref[...], axis=-1, keepdims=True)  # [n_tile,1]
        idx_in = to_idx(in_deg)                      # in [0, m)
        idx_out = to_idx(out_deg)                    # in [0, m)

        if two_m >= 128:
            # Deep enough for the MXU: fused one-hot gather.
            col_ids = jax.lax.broadcasted_iota(jnp.int32, (n_tile, two_m), 1)
            one_hot = jnp.logical_or(col_ids == idx_in,
                                     col_ids == (idx_out + m)).astype(jnp.float32)
            gathered = jnp.dot(one_hot, table_ref[...],
                               preferred_element_type=jnp.float32)
        else:
            # Tiny table: VPU select-accumulate over the 2m rows.
            gathered = jnp.zeros((n_tile, d_pad), jnp.float32)
            for r in range(m):
                row_in = table_ref[r:r + 1, :]
                row_out = table_ref[m + r:m + r + 1, :]
                gathered = gathered + jnp.where(idx_in == r, row_in, 0.0)
                gathered = gathered + jnp.where(idx_out == r, row_out, 0.0)

        o_ref[...] = (node_emb_ref[...] + gathered).astype(o_ref.dtype)


def _round_up(x, mult):
    return ((x + mult - 1) // mult) * mult


def _segment_start_blocks(sorted_vals, n_tiles, n_tile, e_tile):
    """Per-N-tile first e-block index and per-tile block count (host, numpy)."""
    bounds = np.arange(n_tiles + 1, dtype=np.int64) * n_tile
    pos = np.searchsorted(sorted_vals, bounds, side="left")
    starts, ends = pos[:-1], pos[1:]
    start_block = starts // e_tile
    nblocks = np.where(ends > starts, (ends - 1) // e_tile - start_block + 1, 0)
    return start_block.astype(np.int32), int(nblocks.max())


def centrality_encoding(node_emb, edge_index, in_degree_emb, out_degree_emb,
                        *, n_tile=256, e_tile=4096):
    """node_emb: [N, D]; edge_index: [2, E] int; *_degree_emb: [max_degree, D]."""
    node_emb = jnp.asarray(node_emb)
    in_degree_emb = jnp.asarray(in_degree_emb)
    out_degree_emb = jnp.asarray(out_degree_emb)
    edge_np = np.asarray(jax.device_get(edge_index)).astype(np.int64)

    N, D = node_emb.shape
    M = in_degree_emb.shape[0]
    E = edge_np.shape[1]

    # ---- tile sizing (lane-dense D; >=2 N tiles when possible for v7x) ----
    d_pad = _round_up(D, 128)
    n_tile = max(8, min(n_tile, _round_up(-(-N // 2), 8)))
    n_tile = _round_up(n_tile, 8)
    e_tile = max(128, min(e_tile, _round_up(max(E, 1), 128)))
    e_tile = (e_tile // 128) * 128
    n_pad = _round_up(N, n_tile)
    n_tiles = n_pad // n_tile

    # ---- host-side edge preprocessing: sort endpoints, segment per N tile ----
    dst_sorted = np.sort(edge_np[1])
    src_sorted = np.sort(edge_np[0])
    in_off, in_nb = _segment_start_blocks(dst_sorted, n_tiles, n_tile, e_tile)
    out_off, out_nb = _segment_start_blocks(src_sorted, n_tiles, n_tile, e_tile)
    grid_k = max(1, in_nb, out_nb)
    total_blocks = int(max(in_off.max(), out_off.max())) + grid_k
    padded_len = total_blocks * e_tile

    def pack(sorted_vals):
        arr = np.full((1, padded_len), _SENTINEL, np.int32)
        arr[0, :sorted_vals.shape[0]] = sorted_vals.astype(np.int32)
        return jnp.asarray(arr)

    dst_arr = pack(dst_sorted)
    src_arr = pack(src_sorted)

    f32 = jnp.float32
    node = jnp.zeros((n_pad, d_pad), f32).at[:N, :D].set(node_emb.astype(f32))
    # Fused [2M, D] table: rows 0..M-1 = in-degree, rows M..2M-1 = out-degree.
    table = jnp.zeros((2 * M, d_pad), f32)
    table = table.at[:M, :D].set(in_degree_emb.astype(f32))
    table = table.at[M:, :D].set(out_degree_emb.astype(f32))

    # ---- VMEM budget from actual buffers (cap at 32 MiB for v7x headroom) ----
    buf_bytes = (2 * n_tile * d_pad * 4          # node_emb (double-buffered)
                 + 2 * n_tile * d_pad * 4        # output
                 + 2 * 2 * M * d_pad * 4         # fused table
                 + 2 * 2 * e_tile * 4            # dst + src edge blocks
                 + 2 * n_tile * 128 * 4)         # degree accumulators
    vmem_limit = int(min(32 * 1024 * 1024, max(8 * 1024 * 1024, 2 * buf_bytes)))

    grid = (n_tiles, grid_k)

    out = pl.pallas_call(
        _centrality_kernel,
        out_shape=jax.ShapeDtypeStruct((n_pad, d_pad), f32),
        grid_spec=pltpu.PrefetchScalarGridSpec(
            num_scalar_prefetch=2,
            grid=grid,
            in_specs=[
                # sorted dst / src endpoint blocks, per-tile segment offsets
                pl.BlockSpec((1, e_tile),
                             lambda i, k, in_o, out_o: (0, in_o[i] + k)),
                pl.BlockSpec((1, e_tile),
                             lambda i, k, in_o, out_o: (0, out_o[i] + k)),
                pl.BlockSpec((n_tile, d_pad),
                             lambda i, k, in_o, out_o: (i, 0)),
                pl.BlockSpec((2 * M, d_pad),
                             lambda i, k, in_o, out_o: (0, 0)),
            ],
            out_specs=pl.BlockSpec((n_tile, d_pad),
                                   lambda i, k, in_o, out_o: (i, 0)),
            scratch_shapes=[
                pltpu.VMEM((n_tile, 128), jnp.int32),   # in-degree partials
                pltpu.VMEM((n_tile, 128), jnp.int32),   # out-degree partials
            ],
        ),
        compiler_params=pltpu.CompilerParams(
            dimension_semantics=("parallel", "arbitrary"),
            vmem_limit_bytes=vmem_limit,
        ),
    )(jnp.asarray(in_off), jnp.asarray(out_off), dst_arr, src_arr, node, table)

    return out[:N, :D]


def _reference(node_emb, edge_index, in_emb, out_emb, max_degree):
    node_emb = np.asarray(node_emb)
    edge_index = np.asarray(edge_index)
    in_emb = np.asarray(in_emb)
    out_emb = np.asarray(out_emb)
    N = node_emb.shape[0]
    in_deg = np.bincount(edge_index[1], minlength=N).astype(np.int64)
    out_deg = np.bincount(edge_index[0], minlength=N).astype(np.int64)
    in_deg = np.minimum(in_deg, max_degree) - 1
    out_deg = np.minimum(out_deg, max_degree) - 1
    # emulate PyTorch negative-index wrap for degree-0 nodes
    in_deg = np.where(in_deg < 0, in_deg + max_degree, in_deg)
    out_deg = np.where(out_deg < 0, out_deg + max_degree, out_deg)
    return node_emb + in_emb[in_deg] + out_emb[out_deg]


if __name__ == "__main__":
    key = jax.random.PRNGKey(0)

    # ---------- test 1: small table (VPU select path), padded N / D / E ----------
    k_emb, k_in, k_out, k_e = jax.random.split(key, 4)
    N, D, MAX_DEGREE, E_RAW = 40, 32, 8, 100
    node_emb = jax.random.normal(k_emb, (N, D), dtype=jnp.float32)
    in_degree_emb = jax.random.normal(k_in, (MAX_DEGREE, D), dtype=jnp.float32)
    out_degree_emb = jax.random.normal(k_out, (MAX_DEGREE, D), dtype=jnp.float32)
    raw = jax.random.randint(k_e, (2, E_RAW), 0, N, dtype=jnp.int32)
    # undirected edge_index (both directions), mirroring to_undirected()
    edge_index = jnp.concatenate([raw, jnp.stack([raw[1], raw[0]], axis=0)], axis=1)

    ref = _reference(node_emb, edge_index, in_degree_emb, out_degree_emb, MAX_DEGREE)

    # small tiles: exercises multiple N tiles and multiple per-tile E blocks
    out = jax.block_until_ready(
        centrality_encoding(node_emb, edge_index, in_degree_emb, out_degree_emb,
                            n_tile=16, e_tile=128))
    np.testing.assert_allclose(np.asarray(out), ref, rtol=1e-5, atol=1e-5)

    # default (production-sized) tiles
    out2 = jax.block_until_ready(
        centrality_encoding(node_emb, edge_index, in_degree_emb, out_degree_emb))
    np.testing.assert_allclose(np.asarray(out2), ref, rtol=1e-5, atol=1e-5)

    # ---------- test 2: larger table (2M >= 128 -> MXU one-hot path) ----------
    k_emb, k_in, k_out, k_e = jax.random.split(jax.random.PRNGKey(1), 4)
    N2, D2, MAX_DEGREE2, E_RAW2 = 64, 96, 64, 300
    node_emb2 = jax.random.normal(k_emb, (N2, D2), dtype=jnp.float32)
    in_emb2 = jax.random.normal(k_in, (MAX_DEGREE2, D2), dtype=jnp.float32)
    out_emb2 = jax.random.normal(k_out, (MAX_DEGREE2, D2), dtype=jnp.float32)
    raw2 = jax.random.randint(k_e, (2, E_RAW2), 0, N2, dtype=jnp.int32)
    edge_index2 = jnp.concatenate([raw2, jnp.stack([raw2[1], raw2[0]], axis=0)], axis=1)

    ref2 = _reference(node_emb2, edge_index2, in_emb2, out_emb2, MAX_DEGREE2)
    out3 = jax.block_until_ready(
        centrality_encoding(node_emb2, edge_index2, in_emb2, out_emb2))
    np.testing.assert_allclose(np.asarray(out3), ref2, rtol=1e-5, atol=1e-5)

    print("KERNEL_OK")
</pallas_src>

<mosaic_0001>
module attributes {stable_mosaic.version = 11 : i64} {
  func.func @_centrality_kernel(%arg0: i32, %arg1: i32, %arg2: memref<3xi32, #tpu.memory_space<smem>>, %arg3: memref<3xi32, #tpu.memory_space<smem>>, %arg4: memref<1x128xi32, #tpu.memory_space<vmem>>, %arg5: memref<1x128xi32, #tpu.memory_space<vmem>>, %arg6: memref<16x128xf32, #tpu.memory_space<vmem>>, %arg7: memref<16x128xf32, #tpu.memory_space<vmem>>, %arg8: memref<16x128xf32, #tpu.memory_space<vmem>>, %arg9: memref<16x128xi32, #tpu.memory_space<vmem>>, %arg10: memref<16x128xi32, #tpu.memory_space<vmem>>) attributes {dimension_semantics = [#tpu.dimension_semantics<parallel>, #tpu.dimension_semantics<arbitrary>], iteration_bounds = array<i64: 3, 2>, scalar_prefetch = 2 : i64, scratch_operands = 2 : i64, tpu.core_type = #tpu.core_type<tc>, window_params = [{transform_indices = @transform_0, window_bounds = array<i64: 1, 128>}, {transform_indices = @transform_1, window_bounds = array<i64: 1, 128>}, {transform_indices = @transform_2, window_bounds = array<i64: 16, 128>}, {pipeline_mode = #tpu.pipeline_mode<synchronous>, transform_indices = @transform_3, window_bounds = array<i64: 16, 128>}, {transform_indices = @transform_4, window_bounds = array<i64: 16, 128>}]} {
    %c0_i32 = arith.constant 0 : i32
    %0 = arith.cmpi eq, %arg1, %c0_i32 : i32
    %1 = arith.extui %0 : i1 to i32
    %c0_i32_0 = arith.constant 0 : i32
    %2 = arith.cmpi ne, %1, %c0_i32_0 : i32
    scf.if %2 {
      %c0_i32_15 = arith.constant 0 : i32
      %28 = vector.broadcast %c0_i32_15 : i32 to vector<16x128xi32>
      %c0_16 = arith.constant 0 : index
      %c0_17 = arith.constant 0 : index
      %29 = vector.load %arg9[%c0_16, %c0_17] : memref<16x128xi32, #tpu.memory_space<vmem>>, vector<16x128xi32>
      tpu.vector_store %arg9[%c0_16, %c0_17], %28 {strides = array<i32>} : memref<16x128xi32, #tpu.memory_space<vmem>>, vector<16x128xi32>,
      %c0_i32_18 = arith.constant 0 : i32
      %30 = vector.broadcast %c0_i32_18 : i32 to vector<16x128xi32>
      %c0_19 = arith.constant 0 : index
      %c0_20 = arith.constant 0 : index
      %31 = vector.load %arg10[%c0_19, %c0_20] : memref<16x128xi32, #tpu.memory_space<vmem>>, vector<16x128xi32>
      tpu.vector_store %arg10[%c0_19, %c0_20], %30 {strides = array<i32>} : memref<16x128xi32, #tpu.memory_space<vmem>>, vector<16x128xi32>,
    } else {
    }
    %c16_i32 = arith.constant 16 : i32
    %3 = arith.muli %arg0, %c16_i32 : i32
    %4 = tpu.iota {dimensions = array<i32: 0>} : vector<16x128xi32>
    %5 = vector.broadcast %3 : i32 to vector<16x128xi32>
    %6 = arith.addi %4, %5 : vector<16x128xi32>
    %c0_i32_1 = arith.constant 0 : i32
    %7 = vector.broadcast %c0_i32_1 : i32 to vector<16x128xi32>
    %c0_i32_2 = arith.constant 0 : i32
    %8 = vector.broadcast %c0_i32_2 : i32 to vector<16x128xi32>
    %c0 = arith.constant 0 : index
    %c0_3 = arith.constant 0 : index
    %9 = vector.load %arg4[%c0, %c0_3] : memref<1x128xi32, #tpu.memory_space<vmem>>, vector<1x128xi32>
    %c0_4 = arith.constant 0 : index
    %c0_5 = arith.constant 0 : index
    %10 = vector.load %arg5[%c0_4, %c0_5] : memref<1x128xi32, #tpu.memory_space<vmem>>, vector<1x128xi32>
    %11 = vector.broadcast %9 : vector<1x128xi32> to vector<16x128xi32>
    %12 = arith.cmpi eq, %6, %11 : vector<16x128xi32>
    %13 = arith.extui %12 : vector<16x128xi1> to vector<16x128xi32>
    %14 = arith.addi %7, %13 : vector<16x128xi32>
    %15 = vector.broadcast %10 : vector<1x128xi32> to vector<16x128xi32>
    %16 = arith.cmpi eq, %6, %15 : vector<16x128xi32>
    %17 = arith.extui %16 : vector<16x128xi1> to vector<16x128xi32>
    %18 = arith.addi %8, %17 : vector<16x128xi32>
    %c0_6 = arith.constant 0 : index
    %c0_7 = arith.constant 0 : index
    %19 = vector.load %arg9[%c0_6, %c0_7] : memref<16x128xi32, #tpu.memory_space<vmem>>, vector<16x128xi32>
    %20 = arith.addi %19, %14 : vector<16x128xi32>
    %c0_8 = arith.constant 0 : index
    %c0_9 = arith.constant 0 : index
    %21 = vector.load %arg9[%c0_8, %c0_9] : memref<16x128xi32, #tpu.memory_space<vmem>>, vector<16x128xi32>
    tpu.vector_store %arg9[%c0_8, %c0_9], %20 {strides = array<i32>} : memref<16x128xi32, #tpu.memory_space<vmem>>, vector<16x128xi32>,
    %c0_10 = arith.constant 0 : index
    %c0_11 = arith.constant 0 : index
    %22 = vector.load %arg10[%c0_10, %c0_11] : memref<16x128xi32, #tpu.memory_space<vmem>>, vector<16x128xi32>
    %23 = arith.addi %22, %18 : vector<16x128xi32>
    %c0_12 = arith.constant 0 : index
    %c0_13 = arith.constant 0 : index
    %24 = vector.load %arg10[%c0_12, %c0_13] : memref<16x128xi32, #tpu.memory_space<vmem>>, vector<16x128xi32>
    tpu.vector_store %arg10[%c0_12, %c0_13], %23 {strides = array<i32>} : memref<16x128xi32, #tpu.memory_space<vmem>>, vector<16x128xi32>,
    %c1_i32 = arith.constant 1 : i32
    %25 = arith.cmpi eq, %arg1, %c1_i32 : i32
    %26 = arith.extui %25 : i1 to i32
    %c0_i32_14 = arith.constant 0 : i32
    %27 = arith.cmpi ne, %26, %c0_i32_14 : i32
    scf.if %27 {
      %c0_15 = arith.constant 0 : index
      %c0_16 = arith.constant 0 : index
      %28 = vector.load %arg9[%c0_15, %c0_16] : memref<16x128xi32, #tpu.memory_space<vmem>>, vector<16x128xi32>
      %cst = arith.constant dense<0> : vector<16xi32>
      %29 = vector.multi_reduction <add>, %28, %cst [1] : vector<16x128xi32> to vector<16xi32>
      %30 = vector.shape_cast %29 : vector<16xi32> to vector<16x1xi32>
      %c0_17 = arith.constant 0 : index
      %c0_18 = arith.constant 0 : index
      %31 = vector.load %arg10[%c0_17, %c0_18] : memref<16x128xi32, #tpu.memory_space<vmem>>, vector<16x128xi32>
      %cst_19 = arith.constant dense<0> : vector<16xi32>
      %32 = vector.multi_reduction <add>, %31, %cst_19 [1] : vector<16x128xi32> to vector<16xi32>
      %33 = vector.shape_cast %32 : vector<16xi32> to vector<16x1xi32>
      %c8_i32 = arith.constant 8 : i32
      %34 = vector.broadcast %c8_i32 : i32 to vector<16x1xi32>
      %35 = arith.minsi %30, %34 : vector<16x1xi32>
      %c1_i32_20 = arith.constant 1 : i32
      %36 = vector.broadcast %c1_i32_20 : i32 to vector<16x1xi32>
      %37 = arith.subi %35, %36 : vector<16x1xi32>
      %c0_i32_21 = arith.constant 0 : i32
      %38 = vector.broadcast %c0_i32_21 : i32 to vector<16x1xi32>
      %39 = arith.cmpi slt, %37, %38 : vector<16x1xi32>
      %c8_i32_22 = arith.constant 8 : i32
      %40 = vector.broadcast %c8_i32_22 : i32 to vector<16x1xi32>
      %41 = arith.addi %37, %40 : vector<16x1xi32>
      %42 = arith.select %39, %41, %37 : vector<16x1xi1>, vector<16x1xi32>
      %c8_i32_23 = arith.constant 8 : i32
      %43 = vector.broadcast %c8_i32_23 : i32 to vector<16x1xi32>
      %44 = arith.minsi %33, %43 : vector<16x1xi32>
      %c1_i32_24 = arith.constant 1 : i32
      %45 = vector.broadcast %c1_i32_24 : i32 to vector<16x1xi32>
      %46 = arith.subi %44, %45 : vector<16x1xi32>
      %c0_i32_25 = arith.constant 0 : i32
      %47 = vector.broadcast %c0_i32_25 : i32 to vector<16x1xi32>
      %48 = arith.cmpi slt, %46, %47 : vector<16x1xi32>
      %c8_i32_26 = arith.constant 8 : i32
      %49 = vector.broadcast %c8_i32_26 : i32 to vector<16x1xi32>
      %50 = arith.addi %46, %49 : vector<16x1xi32>
      %51 = arith.select %48, %50, %46 : vector<16x1xi1>, vector<16x1xi32>
      %cst_27 = arith.constant 0.000000e+00 : f32
      %52 = vector.broadcast %cst_27 : f32 to vector<16x128xf32>
      %c0_28 = arith.constant 0 : index
      %c0_29 = arith.constant 0 : index
      %53 = vector.load %arg7[%c0_28, %c0_29] : memref<16x128xf32, #tpu.memory_space<vmem>>, vector<1x128xf32>
      %c8 = arith.constant 8 : index
      %c0_30 = arith.constant 0 : index
      %54 = vector.load %arg7[%c8, %c0_30] : memref<16x128xf32, #tpu.memory_space<vmem>>, vector<1x128xf32>
      %c0_i32_31 = arith.constant 0 : i32
      %55 = vector.broadcast %c0_i32_31 : i32 to vector<16x1xi32>
      %56 = arith.cmpi eq, %42, %55 : vector<16x1xi32>
      %cst_32 = arith.constant 0.000000e+00 : f32
      %57 = vector.shape_cast %56 : vector<16x1xi1> to vector<16x1xi1>
      %58 = vector.broadcast %57 : vector<16x1xi1> to vector<16x128xi1>
      %59 = vector.shape_cast %53 : vector<1x128xf32> to vector<1x128xf32>
      %60 = vector.broadcast %59 : vector<1x128xf32> to vector<16x128xf32>
      %61 = vector.broadcast %cst_32 : f32 to vector<16x128xf32>
      %62 = arith.select %58, %60, %61 : vector<16x128xi1>, vector<16x128xf32>
      %63 = arith.addf %52, %62 : vector<16x128xf32>
      %c0_i32_33 = arith.constant 0 : i32
      %64 = vector.broadcast %c0_i32_33 : i32 to vector<16x1xi32>
      %65 = arith.cmpi eq, %51, %64 : vector<16x1xi32>
      %cst_34 = arith.constant 0.000000e+00 : f32
      %66 = vector.shape_cast %65 : vector<16x1xi1> to vector<16x1xi1>
      %67 = vector.broadcast %66 : vector<16x1xi1> to vector<16x128xi1>
      %68 = vector.shape_cast %54 : vector<1x128xf32> to vector<1x128xf32>
      %69 = vector.broadcast %68 : vector<1x128xf32> to vector<16x128xf32>
      %70 = vector.broadcast %cst_34 : f32 to vector<16x128xf32>
      %71 = arith.select %67, %69, %70 : vector<16x128xi1>, vector<16x128xf32>
      %72 = arith.addf %63, %71 : vector<16x128xf32>
      %c1 = arith.constant 1 : index
      %c0_35 = arith.constant 0 : index
      %73 = vector.load %arg7[%c1, %c0_35] : memref<16x128xf32, #tpu.memory_space<vmem>>, vector<1x128xf32>
      %c9 = arith.constant 9 : index
      %c0_36 = arith.constant 0 : index
      %74 = vector.load %arg7[%c9, %c0_36] : memref<16x128xf32, #tpu.memory_space<vmem>>, vector<1x128xf32>
      %c1_i32_37 = arith.constant 1 : i32
      %75 = vector.broadcast %c1_i32_37 : i32 to vector<16x1xi32>
      %76 = arith.cmpi eq, %42, %75 : vector<16x1xi32>
      %cst_38 = arith.constant 0.000000e+00 : f32
      %77 = vector.shape_cast %76 : vector<16x1xi1> to vector<16x1xi1>
      %78 = vector.broadcast %77 : vector<16x1xi1> to vector<16x128xi1>
      %79 = vector.shape_cast %73 : vector<1x128xf32> to vector<1x128xf32>
      %80 = vector.broadcast %79 : vector<1x128xf32> to vector<16x128xf32>
      %81 = vector.broadcast %cst_38 : f32 to vector<16x128xf32>
      %82 = arith.select %78, %80, %81 : vector<16x128xi1>, vector<16x128xf32>
      %83 = arith.addf %72, %82 : vector<16x128xf32>
      %c1_i32_39 = arith.constant 1 : i32
      %84 = vector.broadcast %c1_i32_39 : i32 to vector<16x1xi32>
      %85 = arith.cmpi eq, %51, %84 : vector<16x1xi32>
      %cst_40 = arith.constant 0.000000e+00 : f32
      %86 = vector.shape_cast %85 : vector<16x1xi1> to vector<16x1xi1>
      %87 = vector.broadcast %86 : vector<16x1xi1> to vector<16x128xi1>
      %88 = vector.shape_cast %74 : vector<1x128xf32> to vector<1x128xf32>
      %89 = vector.broadcast %88 : vector<1x128xf32> to vector<16x128xf32>
      %90 = vector.broadcast %cst_40 : f32 to vector<16x128xf32>
      %91 = arith.select %87, %89, %90 : vector<16x128xi1>, vector<16x128xf32>
      %92 = arith.addf %83, %91 : vector<16x128xf32>
      %c2 = arith.constant 2 : index
      %c0_41 = arith.constant 0 : index
      %93 = vector.load %arg7[%c2, %c0_41] : memref<16x128xf32, #tpu.memory_space<vmem>>, vector<1x128xf32>
      %c10 = arith.constant 10 : index
      %c0_42 = arith.constant 0 : index
      %94 = vector.load %arg7[%c10, %c0_42] : memref<16x128xf32, #tpu.memory_space<vmem>>, vector<1x128xf32>
      %c2_i32 = arith.constant 2 : i32
      %95 = vector.broadcast %c2_i32 : i32 to vector<16x1xi32>
      %96 = arith.cmpi eq, %42, %95 : vector<16x1xi32>
      %cst_43 = arith.constant 0.000000e+00 : f32
      %97 = vector.shape_cast %96 : vector<16x1xi1> to vector<16x1xi1>
      %98 = vector.broadcast %97 : vector<16x1xi1> to vector<16x128xi1>
      %99 = vector.shape_cast %93 : vector<1x128xf32> to vector<1x128xf32>
      %100 = vector.broadcast %99 : vector<1x128xf32> to vector<16x128xf32>
      %101 = vector.broadcast %cst_43 : f32 to vector<16x128xf32>
      %102 = arith.select %98, %100, %101 : vector<16x128xi1>, vector<16x128xf32>
      %103 = arith.addf %92, %102 : vector<16x128xf32>
      %c2_i32_44 = arith.constant 2 : i32
      %104 = vector.broadcast %c2_i32_44 : i32 to vector<16x1xi32>
      %105 = arith.cmpi eq, %51, %104 : vector<16x1xi32>
      %cst_45 = arith.constant 0.000000e+00 : f32
      %106 = vector.shape_cast %105 : vector<16x1xi1> to vector<16x1xi1>
      %107 = vector.broadcast %106 : vector<16x1xi1> to vector<16x128xi1>
      %108 = vector.shape_cast %94 : vector<1x128xf32> to vector<1x128xf32>
      %109 = vector.broadcast %108 : vector<1x128xf32> to vector<16x128xf32>
      %110 = vector.broadcast %cst_45 : f32 to vector<16x128xf32>
      %111 = arith.select %107, %109, %110 : vector<16x128xi1>, vector<16x128xf32>
      %112 = arith.addf %103, %111 : vector<16x128xf32>
      %c3 = arith.constant 3 : index
      %c0_46 = arith.constant 0 : index
      %113 = vector.load %arg7[%c3, %c0_46] : memref<16x128xf32, #tpu.memory_space<vmem>>, vector<1x128xf32>
      %c11 = arith.constant 11 : index
      %c0_47 = arith.constant 0 : index
      %114 = vector.load %arg7[%c11, %c0_47] : memref<16x128xf32, #tpu.memory_space<vmem>>, vector<1x128xf32>
      %c3_i32 = arith.constant 3 : i32
      %115 = vector.broadcast %c3_i32 : i32 to vector<16x1xi32>
      %116 = arith.cmpi eq, %42, %115 : vector<16x1xi32>
      %cst_48 = arith.constant 0.000000e+00 : f32
      %117 = vector.shape_cast %116 : vector<16x1xi1> to vector<16x1xi1>
      %118 = vector.broadcast %117 : vector<16x1xi1> to vector<16x128xi1>
      %119 = vector.shape_cast %113 : vector<1x128xf32> to vector<1x128xf32>
      %120 = vector.broadcast %119 : vector<1x128xf32> to vector<16x128xf32>
      %121 = vector.broadcast %cst_48 : f32 to vector<16x128xf32>
      %122 = arith.select %118, %120, %121 : vector<16x128xi1>, vector<16x128xf32>
      %123 = arith.addf %112, %122 : vector<16x128xf32>
      %c3_i32_49 = arith.constant 3 : i32
      %124 = vector.broadcast %c3_i32_49 : i32 to vector<16x1xi32>
      %125 = arith.cmpi eq, %51, %124 : vector<16x1xi32>
      %cst_50 = arith.constant 0.000000e+00 : f32
      %126 = vector.shape_cast %125 : vector<16x1xi1> to vector<16x1xi1>
      %127 = vector.broadcast %126 : vector<16x1xi1> to vector<16x128xi1>
      %128 = vector.shape_cast %114 : vector<1x128xf32> to vector<1x128xf32>
      %129 = vector.broadcast %128 : vector<1x128xf32> to vector<16x128xf32>
      %130 = vector.broadcast %cst_50 : f32 to vector<16x128xf32>
      %131 = arith.select %127, %129, %130 : vector<16x128xi1>, vector<16x128xf32>
      %132 = arith.addf %123, %131 : vector<16x128xf32>
      %c4 = arith.constant 4 : index
      %c0_51 = arith.constant 0 : index
      %133 = vector.load %arg7[%c4, %c0_51] : memref<16x128xf32, #tpu.memory_space<vmem>>, vector<1x128xf32>
      %c12 = arith.constant 12 : index
      %c0_52 = arith.constant 0 : index
      %134 = vector.load %arg7[%c12, %c0_52] : memref<16x128xf32, #tpu.memory_space<vmem>>, vector<1x128xf32>
      %c4_i32 = arith.constant 4 : i32
      %135 = vector.broadcast %c4_i32 : i32 to vector<16x1xi32>
      %136 = arith.cmpi eq, %42, %135 : vector<16x1xi32>
      %cst_53 = arith.constant 0.000000e+00 : f32
      %137 = vector.shape_cast %136 : vector<16x1xi1> to vector<16x1xi1>
      %138 = vector.broadcast %137 : vector<16x1xi1> to vector<16x128xi1>
      %139 = vector.shape_cast %133 : vector<1x128xf32> to vector<1x128xf32>
      %140 = vector.broadcast %139 : vector<1x128xf32> to vector<16x128xf32>
      %141 = vector.broadcast %cst_53 : f32 to vector<16x128xf32>
      %142 = arith.select %138, %140, %141 : vector<16x128xi1>, vector<16x128xf32>
      %143 = arith.addf %132, %142 : vector<16x128xf32>
      %c4_i32_54 = arith.constant 4 : i32
      %144 = vector.broadcast %c4_i32_54 : i32 to vector<16x1xi32>
      %145 = arith.cmpi eq, %51, %144 : vector<16x1xi32>
      %cst_55 = arith.constant 0.000000e+00 : f32
      %146 = vector.shape_cast %145 : vector<16x1xi1> to vector<16x1xi1>
      %147 = vector.broadcast %146 : vector<16x1xi1> to vector<16x128xi1>
      %148 = vector.shape_cast %134 : vector<1x128xf32> to vector<1x128xf32>
      %149 = vector.broadcast %148 : vector<1x128xf32> to vector<16x128xf32>
      %150 = vector.broadcast %cst_55 : f32 to vector<16x128xf32>
      %151 = arith.select %147, %149, %150 : vector<16x128xi1>, vector<16x128xf32>
      %152 = arith.addf %143, %151 : vector<16x128xf32>
      %c5 = arith.constant 5 : index
      %c0_56 = arith.constant 0 : index
      %153 = vector.load %arg7[%c5, %c0_56] : memref<16x128xf32, #tpu.memory_space<vmem>>, vector<1x128xf32>
      %c13 = arith.constant 13 : index
      %c0_57 = arith.constant 0 : index
      %154 = vector.load %arg7[%c13, %c0_57] : memref<16x128xf32, #tpu.memory_space<vmem>>, vector<1x128xf32>
      %c5_i32 = arith.constant 5 : i32
      %155 = vector.broadcast %c5_i32 : i32 to vector<16x1xi32>
      %156 = arith.cmpi eq, %42, %155 : vector<16x1xi32>
      %cst_58 = arith.constant 0.000000e+00 : f32
      %157 = vector.shape_cast %156 : vector<16x1xi1> to vector<16x1xi1>
      %158 = vector.broadcast %157 : vector<16x1xi1> to vector<16x128xi1>
      %159 = vector.shape_cast %153 : vector<1x128xf32> to vector<1x128xf32>
      %160 = vector.broadcast %159 : vector<1x128xf32> to vector<16x128xf32>
      %161 = vector.broadcast %cst_58 : f32 to vector<16x128xf32>
      %162 = arith.select %158, %160, %161 : vector<16x128xi1>, vector<16x128xf32>
      %163 = arith.addf %152, %162 : vector<16x128xf32>
      %c5_i32_59 = arith.constant 5 : i32
      %164 = vector.broadcast %c5_i32_59 : i32 to vector<16x1xi32>
      %165 = arith.cmpi eq, %51, %164 : vector<16x1xi32>
      %cst_60 = arith.constant 0.000000e+00 : f32
      %166 = vector.shape_cast %165 : vector<16x1xi1> to vector<16x1xi1>
      %167 = vector.broadcast %166 : vector<16x1xi1> to vector<16x128xi1>
      %168 = vector.shape_cast %154 : vector<1x128xf32> to vector<1x128xf32>
      %169 = vector.broadcast %168 : vector<1x128xf32> to vector<16x128xf32>
      %170 = vector.broadcast %cst_60 : f32 to vector<16x128xf32>
      %171 = arith.select %167, %169, %170 : vector<16x128xi1>, vector<16x128xf32>
      %172 = arith.addf %163, %171 : vector<16x128xf32>
      %c6 = arith.constant 6 : index
      %c0_61 = arith.constant 0 : index
      %173 = vector.load %arg7[%c6, %c0_61] : memref<16x128xf32, #tpu.memory_space<vmem>>, vector<1x128xf32>
      %c14 = arith.constant 14 : index
      %c0_62 = arith.constant 0 : index
      %174 = vector.load %arg7[%c14, %c0_62] : memref<16x128xf32, #tpu.memory_space<vmem>>, vector<1x128xf32>
      %c6_i32 = arith.constant 6 : i32
      %175 = vector.broadcast %c6_i32 : i32 to vector<16x1xi32>
      %176 = arith.cmpi eq, %42, %175 : vector<16x1xi32>
      %cst_63 = arith.constant 0.000000e+00 : f32
      %177 = vector.shape_cast %176 : vector<16x1xi1> to vector<16x1xi1>
      %178 = vector.broadcast %177 : vector<16x1xi1> to vector<16x128xi1>
      %179 = vector.shape_cast %173 : vector<1x128xf32> to vector<1x128xf32>
      %180 = vector.broadcast %179 : vector<1x128xf32> to vector<16x128xf32>
      %181 = vector.broadcast %cst_63 : f32 to vector<16x128xf32>
      %182 = arith.select %178, %180, %181 : vector<16x128xi1>, vector<16x128xf32>
      %183 = arith.addf %172, %182 : vector<16x128xf32>
      %c6_i32_64 = arith.constant 6 : i32
      %184 = vector.broadcast %c6_i32_64 : i32 to vector<16x1xi32>
      %185 = arith.cmpi eq, %51, %184 : vector<16x1xi32>
      %cst_65 = arith.constant 0.000000e+00 : f32
      %186 = vector.shape_cast %185 : vector<16x1xi1> to vector<16x1xi1>
      %187 = vector.broadcast %186 : vector<16x1xi1> to vector<16x128xi1>
      %188 = vector.shape_cast %174 : vector<1x128xf32> to vector<1x128xf32>
      %189 = vector.broadcast %188 : vector<1x128xf32> to vector<16x128xf32>
      %190 = vector.broadcast %cst_65 : f32 to vector<16x128xf32>
      %191 = arith.select %187, %189, %190 : vector<16x128xi1>, vector<16x128xf32>
      %192 = arith.addf %183, %191 : vector<16x128xf32>
      %c7 = arith.constant 7 : index
      %c0_66 = arith.constant 0 : index
      %193 = vector.load %arg7[%c7, %c0_66] : memref<16x128xf32, #tpu.memory_space<vmem>>, vector<1x128xf32>
      %c15 = arith.constant 15 : index
      %c0_67 = arith.constant 0 : index
      %194 = vector.load %arg7[%c15, %c0_67] : memref<16x128xf32, #tpu.memory_space<vmem>>, vector<1x128xf32>
      %c7_i32 = arith.constant 7 : i32
      %195 = vector.broadcast %c7_i32 : i32 to vector<16x1xi32>
      %196 = arith.cmpi eq, %42, %195 : vector<16x1xi32>
      %cst_68 = arith.constant 0.000000e+00 : f32
      %197 = vector.shape_cast %196 : vector<16x1xi1> to vector<16x1xi1>
      %198 = vector.broadcast %197 : vector<16x1xi1> to vector<16x128xi1>
      %199 = vector.shape_cast %193 : vector<1x128xf32> to vector<1x128xf32>
      %200 = vector.broadcast %199 : vector<1x128xf32> to vector<16x128xf32>
      %201 = vector.broadcast %cst_68 : f32 to vector<16x128xf32>
      %202 = arith.select %198, %200, %201 : vector<16x128xi1>, vector<16x128xf32>
      %203 = arith.addf %192, %202 : vector<16x128xf32>
      %c7_i32_69 = arith.constant 7 : i32
      %204 = vector.broadcast %c7_i32_69 : i32 to vector<16x1xi32>
      %205 = arith.cmpi eq, %51, %204 : vector<16x1xi32>
      %cst_70 = arith.constant 0.000000e+00 : f32
      %206 = vector.shape_cast %205 : vector<16x1xi1> to vector<16x1xi1>
      %207 = vector.broadcast %206 : vector<16x1xi1> to vector<16x128xi1>
      %208 = vector.shape_cast %194 : vector<1x128xf32> to vector<1x128xf32>
      %209 = vector.broadcast %208 : vector<1x128xf32> to vector<16x128xf32>
      %210 = vector.broadcast %cst_70 : f32 to vector<16x128xf32>
      %211 = arith.select %207, %209, %210 : vector<16x128xi1>, vector<16x128xf32>
      %212 = arith.addf %203, %211 : vector<16x128xf32>
      %c0_71 = arith.constant 0 : index
      %c0_72 = arith.constant 0 : index
      %213 = vector.load %arg6[%c0_71, %c0_72] : memref<16x128xf32, #tpu.memory_space<vmem>>, vector<16x128xf32>
      %214 = arith.addf %213, %212 : vector<16x128xf32>
      %c0_73 = arith.constant 0 : index
      %c0_74 = arith.constant 0 : index
      %215 = vector.load %arg8[%c0_73, %c0_74] : memref<16x128xf32, #tpu.memory_space<vmem>>, vector<16x128xf32>
      tpu.vector_store %arg8[%c0_73, %c0_74], %214 {strides = array<i32>} : memref<16x128xf32, #tpu.memory_space<vmem>>, vector<16x128xf32>,
    } else {
    }
    return
  }
  func.func @transform_0(%arg0: i32, %arg1: i32, %arg2: memref<3xi32, #tpu.memory_space<smem>>, %arg3: memref<3xi32, #tpu.memory_space<smem>>) -> (i32, i32) {
    %0 = arith.index_cast %arg0 : i32 to index
    %1 = memref.load %arg2[%0] : memref<3xi32, #tpu.memory_space<smem>>
    %2 = arith.addi %1, %arg1 : i32
    %c0_i32 = arith.constant 0 : i32
    %c0_i32_0 = arith.constant 0 : i32
    return %c0_i32, %2 : i32, i32
  }
  func.func @transform_1(%arg0: i32, %arg1: i32, %arg2: memref<3xi32, #tpu.memory_space<smem>>, %arg3: memref<3xi32, #tpu.memory_space<smem>>) -> (i32, i32) {
    %0 = arith.index_cast %arg0 : i32 to index
    %1 = memref.load %arg3[%0] : memref<3xi32, #tpu.memory_space<smem>>
    %2 = arith.addi %1, %arg1 : i32
    %c0_i32 = arith.constant 0 : i32
    %c0_i32_0 = arith.constant 0 : i32
    return %c0_i32, %2 : i32, i32
  }
  func.func @transform_2(%arg0: i32, %arg1: i32, %arg2: memref<3xi32, #tpu.memory_space<smem>>, %arg3: memref<3xi32, #tpu.memory_space<smem>>) -> (i32, i32) {
    %c0_i32 = arith.constant 0 : i32
    %c0_i32_0 = arith.constant 0 : i32
    return %arg0, %c0_i32 : i32, i32
  }
  func.func @transform_3(%arg0: i32, %arg1: i32, %arg2: memref<3xi32, #tpu.memory_space<smem>>, %arg3: memref<3xi32, #tpu.memory_space<smem>>) -> (i32, i32) {
    %c0_i32 = arith.constant 0 : i32
    %c0_i32_0 = arith.constant 0 : i32
    %c0_i32_1 = arith.constant 0 : i32
    return %c0_i32, %c0_i32_0 : i32, i32
  }
  func.func @transform_4(%arg0: i32, %arg1: i32, %arg2: memref<3xi32, #tpu.memory_space<smem>>, %arg3: memref<3xi32, #tpu.memory_space<smem>>) -> (i32, i32) {
    %c0_i32 = arith.constant 0 : i32
    %c0_i32_0 = arith.constant 0 : i32
    return %arg0, %c0_i32 : i32, i32
  }
}

</mosaic_0001>

<llo_original>
// kernel: tpu_custom_call.1
$region0: #{tpu_custom_call.1}
  #allocation0 [shape = 'u32[]', space=smem, size = 0x4, offset = 0x4, fixed_abs, tag = 'smem constant byte address 0x4 - core index']
  #allocation1 [shape = 'u32[72,128]{1,0:T(1,128)}', space=vmem, size = 0x9000, scoped, tag = 'internal scratch']
  #allocation2 [shape = 's32[16,128]{1,0:T(8,128)}', space=vmem, size = 0x2000, scoped, tag = 'scratch operand']
  #allocation3 [shape = 's32[16,128]{1,0:T(8,128)}', space=vmem, size = 0x2000, scoped, tag = 'scratch operand']
  #allocation4 [shape = 's32[1]{0}', space=sflag, size = 0x4, scoped, tag = 'scoped memory for tpu_custom_call.1']
  #allocation5 [shape = 'u8[512]{0}', space=smem, size = 0x200, scoped, tag = 'prefetched SMEM operand 0']
  #allocation6 [shape = 'u8[512]{0}', space=smem, size = 0x200, scoped, tag = 'prefetched SMEM operand 1']
  %s0 = inlined_call_operand.hbm [shape: s32[3], index: 0, kind: input, shape index: {}]
  %s1 = inlined_call_operand.hbm [shape: s32[3], index: 1, kind: input, shape index: {}]
  %s2 = inlined_call_operand.hbm [shape: s32[1,384], index: 2, kind: input, shape index: {}]
  %s3 = inlined_call_operand.hbm [shape: s32[1,384], index: 3, kind: input, shape index: {}]
  %s4 = inlined_call_operand.hbm [shape: f32[48,128], index: 4, kind: input, shape index: {}]
  %s5 = inlined_call_operand.hbm [shape: f32[16,128], index: 5, kind: input, shape index: {}]
  %s6 = inlined_call_operand.hbm [shape: f32[48,128], index: 6, kind: output, shape index: {}]
  %s7 = sld [smem:[#allocation0]]
  $region73: #{tpu_custom_call.1} parent=0
    _
  %s9 = ssub.s32 1, %s7
  %s10 = scalar_select 0, %s9, %s7
  %s12 = sshll.u32 %s0, 4
  %s13 = int_to_ptr.hbm [resolvable:$true] %s12
  %15 = dma.hbm_to_smem %s13, 16, [#allocation5], [#allocation4]
  %s17 = sshll.u32 %s1, 4
  %s18 = int_to_ptr.hbm [resolvable:$true] %s17
  %20 = dma.hbm_to_smem %s18, 16, [#allocation6], [#allocation4]
  %22 = dma.done [#allocation4], 32
  %23 = sfence
  $region1: #{tpu_custom_call.1} parent=0
    #allocation7 [shape = 'u8[1024]{0}', space=vmem, size = 0x400, scoped, tag = 'input window, operand 2']
    #allocation8 [shape = 's32[2]{0}', space=sflag, size = 0x8, scoped, tag = 'scoped memory for tpu_custom_call.1']
    #allocation9 [shape = 's32[2]{0}', space=sflag, size = 0x8, scoped, tag = 'scoped memory for tpu_custom_call.1']
    #allocation10 [shape = 'u8[1024]{0}', space=vmem, size = 0x400, scoped, tag = 'input window, operand 3']
    #allocation11 [shape = 's32[2]{0}', space=sflag, size = 0x8, scoped, tag = 'scoped memory for tpu_custom_call.1']
    #allocation12 [shape = 'u8[16384]{0}', space=vmem, size = 0x4000, scoped, tag = 'input window, operand 4']
    #allocation13 [shape = 'u8[8192]{0}', space=vmem, size = 0x2000, scoped, tag = 'input window, operand 5, single buffered']
    #allocation14 [shape = 's32[1]{0}', space=sflag, size = 0x4, scoped, tag = 'scoped memory for tpu_custom_call.1']
    #allocation15 [shape = 'u8[16384]{0}', space=vmem, size = 0x4000, scoped, tag = 'output window, operand 0']
    %24 = vsyncpa [#allocation8], 0
    %s25 = scalar_lea.sflag [#allocation8], 1
    %26 = vsyncpa %s25, 0
    %27 = vsyncpa [#allocation11], 0
    %s28 = scalar_lea.sflag [#allocation11], 1
    %29 = vsyncpa %s28, 0
    %30 = vsyncpa [#allocation14], 0
    %31 = vsyncpa [#allocation9], 0
    %s32 = scalar_lea.sflag [#allocation9], 1
    %33 = vsyncpa %s32, 0
    loop: start=0, step=1, limit=8
    $region2: #{tpu_custom_call.1} parent=1 // loop_pre_header
      _
    $region3: #{tpu_custom_call.1} parent=1 // loop_header
      %s35 = sphi 0, %s39
      %p36 = scmp.ge.s32.totalorder %s35, 8
      %s42 = sphi 0, %s54
      %s43 = sphi 0, %s50
      %s44 = sphi 0, %s42
      %s45 = sphi 0, %s43
      %s46 = sphi 0, %s44
      %s47 = sphi 0, %s45
      %s61 = sphi 0, %s63
      %s64 = sphi 0, %s61
      %s65 = sphi 0, %s64
      %s81 = sphi 0, %s65
      %s91 = sphi 0, %s93
      %s94 = sphi 0, %s91
      %s95 = sphi 0, %s94
      %s111 = sphi 0, %s95
      %s117 = sphi 0, %s119
      %s120 = sphi 0, %s117
      %s121 = sphi 0, %s120
      %s137 = sphi 0, %s121
      %s141 = sphi 0, %s141
      %s143 = sphi 0, %s141
      %s144 = sphi 0, %s143
      %s158 = sphi 0, %s144
      %s164 = sphi 0, %s166
      %s167 = sphi 0, %s164
      %s168 = sphi 0, %s167
      %s184 = sphi 0, %s168
    $region4: #{tpu_custom_call.1} parent=1 // loop_header_branch
      %38 = sbr.rel (%p36) target = $region8
    $region5: #{tpu_custom_call.1} parent=1 // loop_body
      %s40 = ssub.s32 %s35, 1
      %s41 = ssub.s32 %s35, 2
      %s48 = sadd.s32 1, %s43
      %p49 = scmp.ge.s32.totalorder %s48, 2
      %s50 = scalar_select %p49, 0, %s48
      %s51 = sadd.s32 1, %s42
      %s52 = scalar_select %p49, %s51, %s42
      %p53 = scmp.ge.s32.totalorder %s52, 3
      %s54 = scalar_select %p53, 0, %s52
      %s55 = sld [smem:[#allocation5 + %s42]]
      %s56 = sadd.s32 %s55, %s43
      %s57 = sld [smem:[#allocation5 + %s54]]
      %s58 = sadd.s32 %s57, %s50
      %s59 = ssub.s32 %s56, %s58
      %p60 = scmp.eq.s32.totalorder %s59, 0
      %s62 = sadd.s32 %s61, 1
      %s63 = scalar_select %p60, %s61, %s62
      %p66 = pneg %p60
      %p67 = scmp.eq.s32.totalorder %s35, 5
      %p68 = por %p66, %p67
      %p69 = scmp.ne.s32.totalorder %s61, %s64
      %p70 = scmp.eq.s32.totalorder %s35, 0
      %p71 = por %p69, %p70
      %p72 = scmp.ne.s32.totalorder %s61, %s64
      %p73 = scmp.eq.s32.totalorder %s40, 5
      %p74 = por %p72, %p73
      %p75 = scmp.ne.s32.totalorder %s64, %s65
      %p76 = scmp.eq.s32.totalorder %s40, 0
      %p77 = por %p75, %p76
      %p78 = scmp.ne.s32.totalorder %s64, %s65
      %p79 = scmp.eq.s32.totalorder %s41, 5
      %p80 = por %p78, %p79
      %p82 = scmp.ne.s32.totalorder %s65, %s81
      %p83 = scmp.eq.s32.totalorder %s41, 0
      %p84 = por %p82, %p83
      %s85 = sld [smem:[#allocation6 + %s42]]
      %s86 = sadd.s32 %s85, %s43
      %s87 = sld [smem:[#allocation6 + %s54]]
      %s88 = sadd.s32 %s87, %s50
      %s89 = ssub.s32 %s86, %s88
      %p90 = scmp.eq.s32.totalorder %s89, 0
      %s92 = sadd.s32 %s91, 1
      %s93 = scalar_select %p90, %s91, %s92
      %p96 = pneg %p90
      %p97 = scmp.eq.s32.totalorder %s35, 5
      %p98 = por %p96, %p97
      %p99 = scmp.ne.s32.totalorder %s91, %s94
      %p100 = scmp.eq.s32.totalorder %s35, 0
      %p101 = por %p99, %p100
      %p102 = scmp.ne.s32.totalorder %s91, %s94
      %p103 = scmp.eq.s32.totalorder %s40, 5
      %p104 = por %p102, %p103
      %p105 = scmp.ne.s32.totalorder %s94, %s95
      %p106 = scmp.eq.s32.totalorder %s40, 0
      %p107 = por %p105, %p106
      %p108 = scmp.ne.s32.totalorder %s94, %s95
      %p109 = scmp.eq.s32.totalorder %s41, 5
      %p110 = por %p108, %p109
      %p112 = scmp.ne.s32.totalorder %s95, %s111
      %p113 = scmp.eq.s32.totalorder %s41, 0
      %p114 = por %p112, %p113
      %s115 = ssub.s32 %s42, %s54
      %p116 = scmp.eq.s32.totalorder %s115, 0
      %s118 = sadd.s32 %s117, 1
      %s119 = scalar_select %p116, %s117, %s118
      %p122 = pneg %p116
      %p123 = scmp.eq.s32.totalorder %s35, 5
      %p124 = por %p122, %p123
      %p125 = scmp.ne.s32.totalorder %s117, %s120
      %p126 = scmp.eq.s32.totalorder %s35, 0
      %p127 = por %p125, %p126
      %p128 = scmp.ne.s32.totalorder %s117, %s120
      %p129 = scmp.eq.s32.totalorder %s40, 5
      %p130 = por %p128, %p129
      %p131 = scmp.ne.s32.totalorder %s120, %s121
      %p132 = scmp.eq.s32.totalorder %s40, 0
      %p133 = por %p131, %p132
      %p134 = scmp.ne.s32.totalorder %s120, %s121
      %p135 = scmp.eq.s32.totalorder %s41, 5
      %p136 = por %p134, %p135
      %p138 = scmp.ne.s32.totalorder %s121, %s137
      %p139 = scmp.eq.s32.totalorder %s41, 0
      %p140 = por %p138, %p139
      %s142 = sadd.s32 %s141, 1
      %p145 = scmp.eq.s32.totalorder %s35, 5
      %p146 = scmp.ne.s32.totalorder %s141, %s143
      %p147 = scmp.eq.s32.totalorder %s35, 0
      %p148 = por %p146, %p147
      %p149 = scmp.ne.s32.totalorder %s141, %s143
      %p150 = scmp.eq.s32.totalorder %s40, 5
      %p151 = por %p149, %p150
      %p152 = scmp.ne.s32.totalorder %s143, %s144
      %p153 = scmp.eq.s32.totalorder %s40, 0
      %p154 = por %p152, %p153
      %p155 = scmp.ne.s32.totalorder %s143, %s144
      %p156 = scmp.eq.s32.totalorder %s41, 5
      %p157 = por %p155, %p156
      %p159 = scmp.ne.s32.totalorder %s144, %s158
      %p160 = scmp.eq.s32.totalorder %s41, 0
      %p161 = por %p159, %p160
      %s162 = ssub.s32 %s42, %s54
      %p163 = scmp.eq.s32.totalorder %s162, 0
      %s165 = sadd.s32 %s164, 1
      %s166 = scalar_select %p163, %s164, %s165
      %p169 = pneg %p163
      %p170 = scmp.eq.s32.totalorder %s35, 5
      %p171 = por %p169, %p170
      %p172 = scmp.ne.s32.totalorder %s164, %s167
      %p173 = scmp.eq.s32.totalorder %s35, 0
      %p174 = por %p172, %p173
      %p175 = scmp.ne.s32.totalorder %s164, %s167
      %p176 = scmp.eq.s32.totalorder %s40, 5
      %p177 = por %p175, %p176
      %p178 = scmp.ne.s32.totalorder %s167, %s168
      %p179 = scmp.eq.s32.totalorder %s40, 0
      %p180 = por %p178, %p179
      %p181 = scmp.ne.s32.totalorder %s167, %s168
      %p182 = scmp.eq.s32.totalorder %s41, 5
      %p183 = por %p181, %p182
      %p185 = scmp.ne.s32.totalorder %s168, %s184
      %p186 = scmp.eq.s32.totalorder %s41, 0
      %p187 = por %p185, %p186
      %p188 = scmp.le.s32.totalorder 1, %s35
      %p189 = scmp.lt.s32.totalorder %s35, 7
      %p190 = pnand %p188, %p189
      %p191 = pneg %p190
      // Predicated region
      $region9: #{tpu_custom_call.1} parent=5 // pred_check
        _
      $region10: #{tpu_custom_call.1} parent=5 // pred_check_branch
        %193 = sbr.rel (%p190) target = $region12
      $region11: #{tpu_custom_call.1} parent=5 // pred_region
        %s194 = ssub.s32 %s35, 1
        // Predicated region
        $region13: #{tpu_custom_call.1} parent=11 // pred_check
          %p195 = pneg %p154
        $region14: #{tpu_custom_call.1} parent=11 // pred_check_branch
          %197 = sbr.rel (%p195) target = $region16
        $region15: #{tpu_custom_call.1} parent=11 // pred_region
          %199 = vsyncadd [#allocation14], 0
          %s200 = sshll.u32 %s5, 4
          %s201 = int_to_ptr.hbm [resolvable:$true] %s200
          %s202 = sshll.u32 [#allocation13], 4
          %s203 = int_to_ptr.vmem [resolvable:$true] %s202
          %208 = dma.hbm_to_vmem [thread:$0]  %s201, 256, %s203, [#allocation14], 128, 128, 8
        $region16: #{tpu_custom_call.1} parent=11 // pred_fallthru
          _
      $region12: #{tpu_custom_call.1} parent=5 // pred_fallthru
        _
      %p209 = scmp.lt.s32.totalorder %s35, 6
      // Predicated region
      $region17: #{tpu_custom_call.1} parent=5 // pred_check
        %p210 = pneg %p209
      $region18: #{tpu_custom_call.1} parent=5 // pred_check_branch
        %212 = sbr.rel (%p210) target = $region20
      $region19: #{tpu_custom_call.1} parent=5 // pred_region
        // Predicated region
        $region21: #{tpu_custom_call.1} parent=19 // pred_check
          %p213 = pneg %p71
        $region22: #{tpu_custom_call.1} parent=19 // pred_check_branch
          %215 = sbr.rel (%p213) target = $region24
        $region23: #{tpu_custom_call.1} parent=19 // pred_region
          %s216 = sand.u32 %s61, 1
          %s217 = scalar_lea.sflag [#allocation8], %s216
          %s218 = sand.u32 %s61, 1
          %s219 = scalar_lea.vmem [#allocation7], %s218
          %s220 = sld [smem:[#allocation5 + %s42]]
          %s221 = sadd.s32 %s220, %s43
          %223 = vsyncadd %s217, 0
          %s224 = scalar_lea.hbm %s2, %s221
          %s226 = sshll.u32 %s224, 4
          %s227 = int_to_ptr.hbm [resolvable:$true] %s226
          %s228 = sshll.u32 %s219, 4
          %s229 = int_to_ptr.vmem [resolvable:$true] %s228
          %231 = dma.hbm_to_vmem [thread:$0]  %s227, 16, %s229, %s217
        $region24: #{tpu_custom_call.1} parent=19 // pred_fallthru
          _
        // Predicated region
        $region25: #{tpu_custom_call.1} parent=19 // pred_check
          %p232 = pneg %p101
        $region26: #{tpu_custom_call.1} parent=19 // pred_check_branch
          %234 = sbr.rel (%p232) target = $region28
        $region27: #{tpu_custom_call.1} parent=19 // pred_region
          %s235 = sand.u32 %s35, 1
          %s236 = scalar_lea.sflag [#allocation11], %s235
          %s237 = sand.u32 %s91, 1
          %s238 = scalar_lea.vmem [#allocation10], %s237
          %s239 = sld [smem:[#allocation6 + %s42]]
          %s240 = sadd.s32 %s239, %s43
          %242 = vsyncadd %s236, 0
          %s243 = scalar_lea.hbm %s3, %s240
          %s245 = sshll.u32 %s243, 4
          %s246 = int_to_ptr.hbm [resolvable:$true] %s245
          %s247 = sshll.u32 %s238, 4
          %s248 = int_to_ptr.vmem [resolvable:$true] %s247
          %250 = dma.hbm_to_vmem [thread:$0]  %s246, 16, %s248, %s236
        $region28: #{tpu_custom_call.1} parent=19 // pred_fallthru
          _
        // Predicated region
        $region29: #{tpu_custom_call.1} parent=19 // pred_check
          %p251 = pneg %p127
        $region30: #{tpu_custom_call.1} parent=19 // pred_check_branch
          %253 = sbr.rel (%p251) target = $region32
        $region31: #{tpu_custom_call.1} parent=19 // pred_region
          %s254 = sand.u32 %s35, 1
          %s255 = scalar_lea.sflag [#allocation11], %s254
          %s256 = sand.u32 %s117, 1
          %s257 = smul.addr %s256, 16
          %s258 = scalar_lea.vmem [#allocation12], %s257
          %s259 = smul.u32 2, %s42
          %261 = vsyncadd %s255, 0
          %s262 = smul.addr %s259, 8
          %s263 = scalar_lea.hbm %s4, %s262
          %s264 = sshll.u32 %s263, 4
          %s265 = int_to_ptr.hbm [resolvable:$true] %s264
          %s266 = sshll.u32 %s258, 4
          %s267 = int_to_ptr.vmem [resolvable:$true] %s266
          %272 = dma.hbm_to_vmem [thread:$0]  %s265, 256, %s267, %s255, 128, 128, 8
        $region32: #{tpu_custom_call.1} parent=19 // pred_fallthru
          _
      $region20: #{tpu_custom_call.1} parent=5 // pred_fallthru
        _
      %p273 = scmp.le.s32.totalorder 1, %s35
      %p274 = scmp.lt.s32.totalorder %s35, 7
      %p275 = pnand %p273, %p274
      %p276 = pneg %p275
      // Predicated region
      $region33: #{tpu_custom_call.1} parent=5 // pred_check
        _
      $region34: #{tpu_custom_call.1} parent=5 // pred_check_branch
        %278 = sbr.rel (%p275) target = $region36
      $region35: #{tpu_custom_call.1} parent=5 // pred_region
        %s279 = ssub.s32 %s35, 1
        %s280 = sand.u32 %s64, 1
        %s281 = scalar_lea.sflag [#allocation8], %s280
        %s282 = sand.u32 %s64, 1
        %s283 = scalar_lea.vmem [#allocation7], %s282
        // Predicated region
        $region37: #{tpu_custom_call.1} parent=35 // pred_check
          %p284 = pneg %p77
        $region38: #{tpu_custom_call.1} parent=35 // pred_check_branch
          %286 = sbr.rel (%p284) target = $region40
        $region39: #{tpu_custom_call.1} parent=35 // pred_region
          %288 = dma.done %s281, 16
        $region40: #{tpu_custom_call.1} parent=35 // pred_fallthru
          _
        %s289 = sand.u32 %s40, 1
        %s290 = scalar_lea.sflag [#allocation11], %s289
        %s291 = sand.u32 %s94, 1
        %s292 = scalar_lea.vmem [#allocation10], %s291
        // Predicated region
        $region41: #{tpu_custom_call.1} parent=35 // pred_check
          %p293 = pneg %p107
        $region42: #{tpu_custom_call.1} parent=35 // pred_check_branch
          %295 = sbr.rel (%p293) target = $region44
        $region43: #{tpu_custom_call.1} parent=35 // pred_region
          %297 = dma.done %s290, 16
        $region44: #{tpu_custom_call.1} parent=35 // pred_fallthru
          _
        %s298 = sand.u32 %s40, 1
        %s299 = scalar_lea.sflag [#allocation11], %s298
        %s300 = sand.u32 %s120, 1
        %s301 = smul.addr %s300, 16
        %s302 = scalar_lea.vmem [#allocation12], %s301
        // Predicated region
        $region45: #{tpu_custom_call.1} parent=35 // pred_check
          %p303 = pneg %p133
        $region46: #{tpu_custom_call.1} parent=35 // pred_check_branch
          %305 = sbr.rel (%p303) target = $region48
        $region47: #{tpu_custom_call.1} parent=35 // pred_region
          %307 = dma.done %s299, 256
        $region48: #{tpu_custom_call.1} parent=35 // pred_fallthru
          _
        // Predicated region
        $region49: #{tpu_custom_call.1} parent=35 // pred_check
          %p308 = pneg %p154
        $region50: #{tpu_custom_call.1} parent=35 // pred_check_branch
          %310 = sbr.rel (%p308) target = $region52
        $region51: #{tpu_custom_call.1} parent=35 // pred_region
          %312 = dma.done [#allocation14], 256
        $region52: #{tpu_custom_call.1} parent=35 // pred_fallthru
          _
        %s313 = sand.u32 %s64, 1
        %s314 = scalar_lea.sflag [#allocation8], %s313
        %s315 = sand.u32 %s64, 1
        %s316 = scalar_lea.vmem [#allocation7], %s315
        %p317 = pneg %p77
        %p318 = pneg %p74
        %s319 = sand.u32 %s40, 1
        %s320 = scalar_lea.sflag [#allocation11], %s319
        %s321 = sand.u32 %s94, 1
        %s322 = scalar_lea.vmem [#allocation10], %s321
        %p323 = pneg %p107
        %p324 = pneg %p104
        %s325 = sand.u32 %s40, 1
        %s326 = scalar_lea.sflag [#allocation11], %s325
        %s327 = sand.u32 %s120, 1
        %s328 = smul.addr %s327, 16
        %s329 = scalar_lea.vmem [#allocation12], %s328
        %p330 = pneg %p133
        %p331 = pneg %p130
        %p332 = pneg %p154
        %p333 = pneg %p151
        %p334 = pneg %p180
        %p335 = pneg %p177
        %s336 = sand.u32 %s167, 1
        %s337 = scalar_lea.sflag [#allocation9], %s336
        %s338 = sand.u32 %s167, 1
        %s339 = smul.addr %s338, 16
        %s340 = scalar_lea.vmem [#allocation15], %s339
        %s341 = sld [smem:[#allocation5 + %s44]]
        %s342 = sadd.s32 %s341, %s45
        %s343 = sld [smem:[#allocation6 + %s44]]
        %s344 = sadd.s32 %s343, %s45
        %s345 = smul.u32 2, %s44
        %s346 = smul.u32 2, %s44
        %p347 = scmp.eq.s32.totalorder %s45, 0
        // Predicated region
        $region53: #{tpu_custom_call.1} parent=35 // pred_check
          %p348 = pneg %p347
        $region54: #{tpu_custom_call.1} parent=35 // pred_check_branch
          %350 = sbr.rel (%p348) target = $region56
        $region55: #{tpu_custom_call.1} parent=35 // pred_region
          %351 = vst [vmem:[#allocation2] sm:$0xff] 0
          %352 = vst [vmem:[#allocation2 + $0x8] sm:$0xff] 0
          %353 = vst [vmem:[#allocation3] sm:$0xff] 0
          %354 = vst [vmem:[#allocation3 + $0x8] sm:$0xff] 0
        $region56: #{tpu_custom_call.1} parent=35 // pred_fallthru
          _
        %s355 = smul.u32 %s44, 16
        %v356 = vlaneseq
        %v357 = vshrl.u32 %v356, 7
        %v358 = vadd.s32 %v357, 8
        %v359 = vstv %s355
        %v360 = vadd.s32 %v357, %v359
        %v361 = vadd.s32 %v358, %v359
        %v362 = vld [vmem:[%s283] sm:$0x1]
        %v363 = vld [vmem:[%s292] sm:$0x1]
        %v364 = vperm.slane %v362, 0
        %vm365 = vcmp.eq.s32.totalorder %v360, %v364
        %vm366 = vcmp.eq.s32.totalorder %v361, %v364
        %v367 = vsel %vm365, 1, 0
        %v368 = vsel %vm366, 1, 0
        %v369 = vperm.slane %v363, 0
        %vm370 = vcmp.eq.s32.totalorder %v360, %v369
        %vm371 = vcmp.eq.s32.totalorder %v361, %v369
        %v372 = vsel %vm370, 1, 0
        %v373 = vsel %vm371, 1, 0
        %v374 = vld [vmem:[#allocation2] sm:$0xff]
        %v375 = vld [vmem:[#allocation2 + $0x8] sm:$0xff]
        %v376 = vadd.s32 %v374, %v367
        %v377 = vadd.s32 %v375, %v368
        %378 = vst [vmem:[#allocation2] sm:$0xff] %v376
        %379 = vst [vmem:[#allocation2 + $0x8] sm:$0xff] %v377
        %v380 = vld [vmem:[#allocation3] sm:$0xff]
        %v381 = vld [vmem:[#allocation3 + $0x8] sm:$0xff]
        %v382 = vadd.s32 %v380, %v372
        %v383 = vadd.s32 %v381, %v373
        %384 = vst [vmem:[#allocation3] sm:$0xff] %v382
        %385 = vst [vmem:[#allocation3 + $0x8] sm:$0xff] %v383
        %p386 = scmp.eq.s32.totalorder %s45, 1
        // Predicated region
        $region57: #{tpu_custom_call.1} parent=35 // pred_check
          %p387 = pneg %p386
        $region58: #{tpu_custom_call.1} parent=35 // pred_check_branch
          %389 = sbr.rel (%p387) target = $region60
        $region59: #{tpu_custom_call.1} parent=35 // pred_region
          %v390 = vld [vmem:[#allocation2] sm:$0xff]
          %v391 = vld [vmem:[#allocation2 + $0x8] sm:$0xff]
          %v392 = vand.u32 %v390, 65535
          %v393 = vshrl.u32 %v390, 16
          %v394 = vcvt.s32.f32 %v392
          %v395 = vcvt.s32.f32 %v393
          %396 = vadd.xlane.f32.xlu0 %v394
          %v397 = vpop.xlane.xlu0 %396
          %398 = vadd.xlane.f32.xlu0 %v395
          %v399 = vpop.xlane.xlu0 %398
          %v400 = vcvt.f32.s32 %v397
          %v401 = vcvt.f32.s32 %v399
          %v402 = vshll.u32 %v401, 16
          %v403 = vadd.s32 %v402, %v400
          %v404 = vand.u32 %v391, 65535
          %v405 = vshrl.u32 %v391, 16
          %v406 = vcvt.s32.f32 %v404
          %v407 = vcvt.s32.f32 %v405
          %408 = vadd.xlane.f32.xlu0 %v406
          %v409 = vpop.xlane.xlu0 %408
          %410 = vadd.xlane.f32.xlu0 %v407
          %v411 = vpop.xlane.xlu0 %410
          %v412 = vcvt.f32.s32 %v409
          %v413 = vcvt.f32.s32 %v411
          %v414 = vshll.u32 %v413, 16
          %v415 = vadd.s32 %v414, %v412
          %v416 = vld [vmem:[#allocation3] sm:$0xff]
          %v417 = vld [vmem:[#allocation3 + $0x8] sm:$0xff]
          %v418 = vand.u32 %v416, 65535
          %v419 = vshrl.u32 %v416, 16
          %v420 = vcvt.s32.f32 %v418
          %v421 = vcvt.s32.f32 %v419
          %422 = vadd.xlane.f32.xlu0 %v420
          %v423 = vpop.xlane.xlu0 %422
          %424 = vadd.xlane.f32.xlu0 %v421
          %v425 = vpop.xlane.xlu0 %424
          %v426 = vcvt.f32.s32 %v423
          %v427 = vcvt.f32.s32 %v425
          %v428 = vshll.u32 %v427, 16
          %v429 = vadd.s32 %v428, %v426
          %v430 = vand.u32 %v417, 65535
          %v431 = vshrl.u32 %v417, 16
          %v432 = vcvt.s32.f32 %v430
          %v433 = vcvt.s32.f32 %v431
          %434 = vadd.xlane.f32.xlu0 %v432
          %v435 = vpop.xlane.xlu0 %434
          %436 = vadd.xlane.f32.xlu0 %v433
          %v437 = vpop.xlane.xlu0 %436
          %v438 = vcvt.f32.s32 %v435
          %v439 = vcvt.f32.s32 %v437
          %v440 = vshll.u32 %v439, 16
          %v441 = vadd.s32 %v440, %v438
          %vm442 = vcmp.lt.s32.totalorder %v403, 8
          %v443 = vsel %vm442, %v403, 8
          %vm444 = vcmp.lt.s32.totalorder %v415, 8
          %v445 = vsel %vm444, %v415, 8
          %v446 = vsub.s32 %v443, 1
          %v447 = vsub.s32 %v445, 1
          %vm448 = vcmp.lt.s32.totalorder %v446, 0
          %vm449 = vcmp.lt.s32.totalorder %v447, 0
          %v450 = vadd.s32 %v446, 8
          %v451 = vadd.s32 %v447, 8
          %v452 = vsel %vm448, %v450, %v446
          %v453 = vsel %vm449, %v451, %v447
          %vm454 = vcmp.lt.s32.totalorder %v429, 8
          %v455 = vsel %vm454, %v429, 8
          %vm456 = vcmp.lt.s32.totalorder %v441, 8
          %v457 = vsel %vm456, %v441, 8
          %v458 = vsub.s32 %v455, 1
          %v459 = vsub.s32 %v457, 1
          %vm460 = vcmp.lt.s32.totalorder %v458, 0
          %vm461 = vcmp.lt.s32.totalorder %v459, 0
          %v462 = vadd.s32 %v458, 8
          %v463 = vadd.s32 %v459, 8
          %v464 = vsel %vm460, %v462, %v458
          %v465 = vsel %vm461, %v463, %v459
          %v466 = vld [vmem:[#allocation13] sm:$0x1]
          %v467 = vld [vmem:[#allocation13 + $0x8] sm:$0x1]
          %vm468 = vcmp.eq.s32.totalorder %v452, 0
          %vm469 = vcmp.eq.s32.totalorder %v453, 0
          %v470 = vsel %vm468, 1, 0
          %v471 = vsel %vm469, 1, 0
          %vm472 = vcmp.eq.s32.totalorder %v470, 1
          %vm473 = vcmp.eq.s32.totalorder %v471, 1
          %v474 = vperm.slane %v466, 0
          %v475 = vsel %vm472, %v474, 0.0
          %v476 = vsel %vm473, %v474, 0.0
          %v477 = vadd.f32 %v475, 0.0
          %v478 = vadd.f32 %v476, 0.0
          %vm479 = vcmp.eq.s32.totalorder %v464, 0
          %vm480 = vcmp.eq.s32.totalorder %v465, 0
          %v481 = vsel %vm479, 1, 0
          %v482 = vsel %vm480, 1, 0
          %vm483 = vcmp.eq.s32.totalorder %v481, 1
          %vm484 = vcmp.eq.s32.totalorder %v482, 1
          %v485 = vperm.slane %v467, 0
          %v486 = vsel %vm483, %v485, 0.0
          %v487 = vsel %vm484, %v485, 0.0
          %v488 = vadd.f32 %v477, %v486
          %v489 = vadd.f32 %v478, %v487
          %v490 = vld [vmem:[#allocation13 + $0x1] sm:$0x1]
          %v491 = vld [vmem:[#allocation13 + $0x9] sm:$0x1]
          %vm492 = vcmp.eq.s32.totalorder %v452, 1
          %vm493 = vcmp.eq.s32.totalorder %v453, 1
          %v494 = vsel %vm492, 1, 0
          %v495 = vsel %vm493, 1, 0
          %vm496 = vcmp.eq.s32.totalorder %v494, 1
          %vm497 = vcmp.eq.s32.totalorder %v495, 1
          %v498 = vperm.slane %v490, 0
          %v499 = vsel %vm496, %v498, 0.0
          %v500 = vsel %vm497, %v498, 0.0
          %v501 = vadd.f32 %v488, %v499
          %v502 = vadd.f32 %v489, %v500
          %vm503 = vcmp.eq.s32.totalorder %v464, 1
          %vm504 = vcmp.eq.s32.totalorder %v465, 1
          %v505 = vsel %vm503, 1, 0
          %v506 = vsel %vm504, 1, 0
          %vm507 = vcmp.eq.s32.totalorder %v505, 1
          %vm508 = vcmp.eq.s32.totalorder %v506, 1
          %v509 = vperm.slane %v491, 0
          %v510 = vsel %vm507, %v509, 0.0
          %v511 = vsel %vm508, %v509, 0.0
          %v512 = vadd.f32 %v501, %v510
          %v513 = vadd.f32 %v502, %v511
          %v514 = vld [vmem:[#allocation13 + $0x2] sm:$0x1]
          %v515 = vld [vmem:[#allocation13 + $0xa] sm:$0x1]
          %vm516 = vcmp.eq.s32.totalorder %v452, 2
          %vm517 = vcmp.eq.s32.totalorder %v453, 2
          %v518 = vsel %vm516, 1, 0
          %v519 = vsel %vm517, 1, 0
          %vm520 = vcmp.eq.s32.totalorder %v518, 1
          %vm521 = vcmp.eq.s32.totalorder %v519, 1
          %v522 = vperm.slane %v514, 0
          %v523 = vsel %vm520, %v522, 0.0
          %v524 = vsel %vm521, %v522, 0.0
          %v525 = vadd.f32 %v512, %v523
          %v526 = vadd.f32 %v513, %v524
          %vm527 = vcmp.eq.s32.totalorder %v464, 2
          %vm528 = vcmp.eq.s32.totalorder %v465, 2
          %v529 = vsel %vm527, 1, 0
          %v530 = vsel %vm528, 1, 0
          %vm531 = vcmp.eq.s32.totalorder %v529, 1
          %vm532 = vcmp.eq.s32.totalorder %v530, 1
          %v533 = vperm.slane %v515, 0
          %v534 = vsel %vm531, %v533, 0.0
          %v535 = vsel %vm532, %v533, 0.0
          %v536 = vadd.f32 %v525, %v534
          %v537 = vadd.f32 %v526, %v535
          %v538 = vld [vmem:[#allocation13 + $0x3] sm:$0x1]
          %v539 = vld [vmem:[#allocation13 + $0xb] sm:$0x1]
          %vm540 = vcmp.eq.s32.totalorder %v452, 3
          %vm541 = vcmp.eq.s32.totalorder %v453, 3
          %v542 = vsel %vm540, 1, 0
          %v543 = vsel %vm541, 1, 0
          %vm544 = vcmp.eq.s32.totalorder %v542, 1
          %vm545 = vcmp.eq.s32.totalorder %v543, 1
          %v546 = vperm.slane %v538, 0
          %v547 = vsel %vm544, %v546, 0.0
          %v548 = vsel %vm545, %v546, 0.0
          %v549 = vadd.f32 %v536, %v547
          %v550 = vadd.f32 %v537, %v548
          %vm551 = vcmp.eq.s32.totalorder %v464, 3
          %vm552 = vcmp.eq.s32.totalorder %v465, 3
          %v553 = vsel %vm551, 1, 0
          %v554 = vsel %vm552, 1, 0
          %vm555 = vcmp.eq.s32.totalorder %v553, 1
          %vm556 = vcmp.eq.s32.totalorder %v554, 1
          %v557 = vperm.slane %v539, 0
          %v558 = vsel %vm555, %v557, 0.0
          %v559 = vsel %vm556, %v557, 0.0
          %v560 = vadd.f32 %v549, %v558
          %v561 = vadd.f32 %v550, %v559
          %v562 = vld [vmem:[#allocation13 + $0x4] sm:$0x1]
          %v563 = vld [vmem:[#allocation13 + $0xc] sm:$0x1]
          %vm564 = vcmp.eq.s32.totalorder %v452, 4
          %vm565 = vcmp.eq.s32.totalorder %v453, 4
          %v566 = vsel %vm564, 1, 0
          %v567 = vsel %vm565, 1, 0
          %vm568 = vcmp.eq.s32.totalorder %v566, 1
          %vm569 = vcmp.eq.s32.totalorder %v567, 1
          %v570 = vperm.slane %v562, 0
          %v571 = vsel %vm568, %v570, 0.0
          %v572 = vsel %vm569, %v570, 0.0
          %v573 = vadd.f32 %v560, %v571
          %v574 = vadd.f32 %v561, %v572
          %vm575 = vcmp.eq.s32.totalorder %v464, 4
          %vm576 = vcmp.eq.s32.totalorder %v465, 4
          %v577 = vsel %vm575, 1, 0
          %v578 = vsel %vm576, 1, 0
          %vm579 = vcmp.eq.s32.totalorder %v577, 1
          %vm580 = vcmp.eq.s32.totalorder %v578, 1
          %v581 = vperm.slane %v563, 0
          %v582 = vsel %vm579, %v581, 0.0
          %v583 = vsel %vm580, %v581, 0.0
          %v584 = vadd.f32 %v573, %v582
          %v585 = vadd.f32 %v574, %v583
          %v586 = vld [vmem:[#allocation13 + $0x5] sm:$0x1]
          %v587 = vld [vmem:[#allocation13 + $0xd] sm:$0x1]
          %vm588 = vcmp.eq.s32.totalorder %v452, 5
          %vm589 = vcmp.eq.s32.totalorder %v453, 5
          %v590 = vsel %vm588, 1, 0
          %v591 = vsel %vm589, 1, 0
          %vm592 = vcmp.eq.s32.totalorder %v590, 1
          %vm593 = vcmp.eq.s32.totalorder %v591, 1
          %v594 = vperm.slane %v586, 0
          %v595 = vsel %vm592, %v594, 0.0
          %v596 = vsel %vm593, %v594, 0.0
          %v597 = vadd.f32 %v584, %v595
          %v598 = vadd.f32 %v585, %v596
          %vm599 = vcmp.eq.s32.totalorder %v464, 5
          %vm600 = vcmp.eq.s32.totalorder %v465, 5
          %v601 = vsel %vm599, 1, 0
          %v602 = vsel %vm600, 1, 0
          %vm603 = vcmp.eq.s32.totalorder %v601, 1
          %vm604 = vcmp.eq.s32.totalorder %v602, 1
          %v605 = vperm.slane %v587, 0
          %v606 = vsel %vm603, %v605, 0.0
          %v607 = vsel %vm604, %v605, 0.0
          %v608 = vadd.f32 %v597, %v606
          %v609 = vadd.f32 %v598, %v607
          %v610 = vld [vmem:[#allocation13 + $0x6] sm:$0x1]
          %v611 = vld [vmem:[#allocation13 + $0xe] sm:$0x1]
          %vm612 = vcmp.eq.s32.totalorder %v452, 6
          %vm613 = vcmp.eq.s32.totalorder %v453, 6
          %v614 = vsel %vm612, 1, 0
          %v615 = vsel %vm613, 1, 0
          %vm616 = vcmp.eq.s32.totalorder %v614, 1
          %vm617 = vcmp.eq.s32.totalorder %v615, 1
          %v618 = vperm.slane %v610, 0
          %v619 = vsel %vm616, %v618, 0.0
          %v620 = vsel %vm617, %v618, 0.0
          %v621 = vadd.f32 %v608, %v619
          %v622 = vadd.f32 %v609, %v620
          %vm623 = vcmp.eq.s32.totalorder %v464, 6
          %vm624 = vcmp.eq.s32.totalorder %v465, 6
          %v625 = vsel %vm623, 1, 0
          %v626 = vsel %vm624, 1, 0
          %vm627 = vcmp.eq.s32.totalorder %v625, 1
          %vm628 = vcmp.eq.s32.totalorder %v626, 1
          %v629 = vperm.slane %v611, 0
          %v630 = vsel %vm627, %v629, 0.0
          %v631 = vsel %vm628, %v629, 0.0
          %v632 = vadd.f32 %v621, %v630
          %v633 = vadd.f32 %v622, %v631
          %v634 = vld [vmem:[#allocation13 + $0x7] sm:$0x1]
          %v635 = vld [vmem:[#allocation13 + $0xf] sm:$0x1]
          %vm636 = vcmp.eq.s32.totalorder %v452, 7
          %vm637 = vcmp.eq.s32.totalorder %v453, 7
          %v638 = vsel %vm636, 1, 0
          %v639 = vsel %vm637, 1, 0
          %vm640 = vcmp.eq.s32.totalorder %v638, 1
          %vm641 = vcmp.eq.s32.totalorder %v639, 1
          %v642 = vperm.slane %v634, 0
          %v643 = vsel %vm640, %v642, 0.0
          %v644 = vsel %vm641, %v642, 0.0
          %v645 = vadd.f32 %v632, %v643
          %v646 = vadd.f32 %v633, %v644
          %vm647 = vcmp.eq.s32.totalorder %v464, 7
          %vm648 = vcmp.eq.s32.totalorder %v465, 7
          %v649 = vsel %vm647, 1, 0
          %v650 = vsel %vm648, 1, 0
          %vm651 = vcmp.eq.s32.totalorder %v649, 1
          %vm652 = vcmp.eq.s32.totalorder %v650, 1
          %v653 = vperm.slane %v635, 0
          %v654 = vsel %vm651, %v653, 0.0
          %v655 = vsel %vm652, %v653, 0.0
          %v656 = vadd.f32 %v645, %v654
          %v657 = vadd.f32 %v646, %v655
          %v658 = vld [vmem:[%s302] sm:$0xff]
          %v659 = vld [vmem:[%s302 + $0x8] sm:$0xff]
          %v660 = vadd.f32 %v658, %v656
          %v661 = vadd.f32 %v659, %v657
          %662 = vst [vmem:[%s340] sm:$0xff] %v660
          %663 = vst [vmem:[%s340 + $0x8] sm:$0xff] %v661
        $region60: #{tpu_custom_call.1} parent=35 // pred_fallthru
          _
        %s664 = sand.u32 %s167, 1
        %s665 = scalar_lea.sflag [#allocation9], %s664
        %s666 = sand.u32 %s167, 1
        %s667 = smul.addr %s666, 16
        %s668 = scalar_lea.vmem [#allocation15], %s667
        // Predicated region
        $region61: #{tpu_custom_call.1} parent=35 // pred_check
          %p669 = pneg %p177
        $region62: #{tpu_custom_call.1} parent=35 // pred_check_branch
          %671 = sbr.rel (%p669) target = $region64
        $region63: #{tpu_custom_call.1} parent=35 // pred_region
          %s672 = smul.u32 2, %s44
          %674 = vsyncadd %s665, 0
          %s675 = smul.addr %s672, 8
          %s676 = scalar_lea.hbm %s6, %s675
          %s677 = sshll.u32 %s668, 4
          %s678 = int_to_ptr.vmem [resolvable:$true] %s677
          %s679 = sshll.u32 %s676, 4
          %s680 = int_to_ptr.hbm [resolvable:$true] %s679
          %685 = dma.vmem_to_hbm [thread:$0]  %s678, 256, %s680, %s665, 128, 128, 8
        $region64: #{tpu_custom_call.1} parent=35 // pred_fallthru
          _
      $region36: #{tpu_custom_call.1} parent=5 // pred_fallthru
        _
      %p686 = scmp.le.s32.totalorder 2, %s35
      // Predicated region
      $region65: #{tpu_custom_call.1} parent=5 // pred_check
        %p687 = pneg %p686
      $region66: #{tpu_custom_call.1} parent=5 // pred_check_branch
        %689 = sbr.rel (%p687) target = $region68
      $region67: #{tpu_custom_call.1} parent=5 // pred_region
        %s690 = ssub.s32 %s35, 2
        // Predicated region
        $region69: #{tpu_custom_call.1} parent=67 // pred_check
          %p691 = pneg %p183
        $region70: #{tpu_custom_call.1} parent=67 // pred_check_branch
          %693 = sbr.rel (%p691) target = $region72
        $region71: #{tpu_custom_call.1} parent=67 // pred_region
          %s694 = sand.u32 %s168, 1
          %s695 = scalar_lea.sflag [#allocation9], %s694
          %s696 = sand.u32 %s168, 1
          %s697 = smul.addr %s696, 16
          %s698 = scalar_lea.vmem [#allocation15], %s697
          %700 = dma.done %s695, 256
        $region72: #{tpu_custom_call.1} parent=67 // pred_fallthru
          _
      $region68: #{tpu_custom_call.1} parent=5 // pred_fallthru
        _
    $region6: #{tpu_custom_call.1} parent=1 // loop_footer
      %s39 = sadd.s32 1, %s35
    $region7: #{tpu_custom_call.1} parent=1 // loop_footer_branch
      %34 = sbr.rel target = $region3
    $region8: #{tpu_custom_call.1} parent=1 // loop_exit
      _
    %701 = vsyncpa [#allocation8], 1
    %s702 = scalar_lea.sflag [#allocation8], 1
    %703 = vsyncpa %s702, 1
    %704 = vsyncpa [#allocation11], 1
    %s705 = scalar_lea.sflag [#allocation11], 1
    %706 = vsyncpa %s705, 1
    %707 = vsyncpa [#allocation14], 1
    %708 = vsyncpa [#allocation9], 1
    %s709 = scalar_lea.sflag [#allocation9], 1
    %710 = vsyncpa %s709, 1

</llo_original>
